<compile_context>
chip_gen: v5e
topology: v5e:2x2
jax: 0.10.0
libtpu: 0.0.40
codegen_flags: <defaults>
</compile_context>

<pallas_src>
import functools

import jax
import jax.numpy as jnp
import numpy as np
from jax.experimental import pallas as pl
from jax.experimental.pallas import tpu as pltpu

_LANE = 128


def _round_up(x, m):
  return (x + m - 1) // m * m


@functools.lru_cache(maxsize=1)
def _vmem_limit_bytes():
  """Generation-aware VMEM cap: ~3/4 of physical, never above 100 MiB."""
  cap = 128 * 1024 * 1024
  try:
    info = pltpu.get_tpu_info()
    cap = int(getattr(info, "vmem_capacity_bytes", cap)) or cap
  except Exception:
    pass
  return max(32 * 1024 * 1024, min((cap * 3) // 4, 100 * 1024 * 1024))


def _pick_row_tile(ho, wo, m_target=1024):
  """Largest divisor of Ho with M = trows*Wo <= m_target and M % 8 == 0
  (sublane-aligned flat stores); falls back to the whole image (a block equal
  to the full array dims is always a legal layout)."""
  best = None
  for t in range(1, ho + 1):
    if ho % t:
      continue
    m = t * wo
    if m > m_target:
      break
    if m % 8 == 0 or t == ho:
      best = t
  return best if best is not None else ho


def _space_to_depth(x, ksize, stride, pad):
  """Spatially pad x (NHWC) and split into stride*stride phases.

  Returns (phases, Ho, Wo) with phases: (N, s*s, Lh, Lw, C) so every conv tap
  inside the kernel is a contiguous (trows, Wo, C) slice of one phase.
  For stride == 1 this is just the padded input with a singleton phase axis
  (free reshape, no extra HBM copy beyond the pad itself).
  """
  n, h, w, c = x.shape
  ho = (h + 2 * pad - ksize) // stride + 1
  wo = (w + 2 * pad - ksize) // stride + 1
  xp = jnp.pad(x, ((0, 0), (pad, pad), (pad, pad), (0, 0)))
  if stride == 1:
    return xp[:, None], ho, wo
  lh = ho + (ksize - 1) // stride
  lw = wo + (ksize - 1) // stride
  phase_list = []
  for rh in range(stride):
    for rw in range(stride):
      ph = xp[:, rh::stride, rw::stride, :][:, :lh, :lw, :]
      ph = jnp.pad(ph, ((0, 0), (0, lh - ph.shape[1]),
                        (0, lw - ph.shape[2]), (0, 0)))
      phase_list.append(ph)
  return jnp.stack(phase_list, axis=1), ho, wo


def _conv_bn_kernel(phases_ref, w_ref, bias_ref, *rest, ksize, stride, trows,
                    wo, relu, mode, sc_from_phase, use_patch):
  """Fused KxK conv (BN scale pre-folded into w) + BN bias
     [+ fused 1x1 projection shortcut | + residual add] [+ ReLU].

  One grid cell = (batch n, output-row tile r). The output block is a flat
  (trows*Wo, Cout_p) slab -> unmasked lane-dense stores.
  """
  if use_patch:
    patch_ref = rest[-1]
    rest = rest[:-1]
  if mode == "proj":
    scx_ref, wsc_ref, bsc_ref, o_ref = rest
  elif mode == "add":
    res_ref, o_ref = rest
  else:
    (o_ref,) = rest

  cin = phases_ref.shape[-1]
  rows = trows * wo
  r0 = pl.multiple_of(pl.program_id(1) * trows, trows)

  def tap(kh, kw):
    rh, rw = kh % stride, kw % stride
    qh, qw = kh // stride, kw // stride
    p = phases_ref[rh * stride + rw, pl.ds(r0 + qh, trows), pl.ds(qw, wo), :]
    return p.reshape(rows, cin)

  if use_patch:
    # im2col-lite: stage the K*K shifted windows into one VMEM patch buffer and
    # contract with a single fat-K matmul (wide-Cout / v6e/v7x path).
    for kh in range(ksize):
      for kw in range(ksize):
        t = kh * ksize + kw
        patch_ref[:, t * cin:(t + 1) * cin] = tap(kh, kw)
    acc = jnp.dot(patch_ref[...], w_ref[...],
                  preferred_element_type=jnp.float32)
  else:
    # direct accumulation of K*K small-K matmuls (no staging stores; better on
    # v5e's single vst slot / 128x128 MXU and for narrow Cout).
    acc = None
    for kh in range(ksize):
      for kw in range(ksize):
        t = kh * ksize + kw
        c = jnp.dot(tap(kh, kw), w_ref[t * cin:(t + 1) * cin, :],
                    preferred_element_type=jnp.float32)
        acc = c if acc is None else acc + c

  out = acc + bias_ref[...]                      # folded BatchNorm bias (f32)

  if mode == "proj":
    # fused 1x1/stride-s projection shortcut (BN scale folded into wsc).
    cin_sc = scx_ref.shape[-1]
    if sc_from_phase:
      scx = scx_ref[0, :, :wo, :].reshape(rows, cin_sc)
    else:
      scx = scx_ref[...]
    out = out + (jnp.dot(scx, wsc_ref[...],
                         preferred_element_type=jnp.float32) + bsc_ref[...])
  elif mode == "add":
    out = out + res_ref[...].astype(jnp.float32)

  if relu:
    out = jnp.maximum(out, 0.0)
  o_ref[...] = out.astype(o_ref.dtype)


def conv_bn(phases, w, bias, *, ksize, stride, ho, wo, relu, residual=None,
            shortcut=None, out_dtype=jnp.float32, use_patch=None,
            row_tile_target=1024):
  """Fused conv + folded BN (+ shortcut / residual), flat NHWC-slab output.

  phases:   (N, s*s, Lh, Lw, Cin_p) space-to-depth input, Cin_p % 128 == 0
  w:        (ksize*ksize*Cin_p, Cout_p) im2col weights, BN scale pre-folded
  bias:     (1, Cout_p) f32 folded BatchNorm bias
  residual: optional (N, Ho*Wo, Cout_p) flat tensor added before the ReLU
  shortcut: optional (sc_x, w_sc, b_sc, sc_from_phase, sc_phase) fused 1x1 proj
  returns   (N, Ho*Wo, Cout_p) in out_dtype (reshape to NHWC is free).
  """
  N, ssq, Lh, Lw, Cin_p = phases.shape
  Cout_p = w.shape[-1]
  if use_patch is None:
    # fat-K staging only pays off when the MXU N dim is wide; otherwise the
    # staging stores just burn the (single) vst slot.
    use_patch = Cout_p > 256
  trows = _pick_row_tile(ho, wo, row_tile_target)
  rows = trows * wo
  grid = (N, ho // trows)

  inputs = [phases, w, bias]
  in_specs = [
      # whole padded image resident per n (constant along the row-tile axis).
      pl.BlockSpec((None, ssq, Lh, Lw, Cin_p), lambda n, r: (n, 0, 0, 0, 0)),
      # grid-invariant weights / bias (fetched once across the whole grid).
      pl.BlockSpec((ksize * ksize * Cin_p, Cout_p), lambda n, r: (0, 0)),
      pl.BlockSpec((1, Cout_p), lambda n, r: (0, 0)),
  ]

  mode, sc_from_phase = "plain", False
  flops = 2 * N * ho * wo * (ksize * ksize * Cin_p) * Cout_p
  bytes_accessed = (phases.size * phases.dtype.itemsize
                    + w.size * w.dtype.itemsize + bias.size * 4
                    + N * ho * wo * Cout_p * jnp.dtype(out_dtype).itemsize)

  if shortcut is not None:
    mode = "proj"
    sc_x, w_sc, b_sc, sc_from_phase, sc_q = shortcut
    cin_sc = sc_x.shape[-1]
    if sc_from_phase:
      # reuse one phase of conv1's space-to-depth tensor: no x[:, ::s, ::s]
      # materialization, just an extra DMA stream from the existing array.
      lw_sc = sc_x.shape[3]
      in_specs.append(pl.BlockSpec((None, 1, trows, lw_sc, cin_sc),
                                   lambda n, r: (n, sc_q, r, 0, 0)))
    else:
      in_specs.append(pl.BlockSpec((None, rows, cin_sc),
                                   lambda n, r: (n, r, 0)))
    in_specs += [pl.BlockSpec((cin_sc, Cout_p), lambda n, r: (0, 0)),
                 pl.BlockSpec((1, Cout_p), lambda n, r: (0, 0))]
    inputs += [sc_x, w_sc, b_sc]
    flops += 2 * N * ho * wo * cin_sc * Cout_p
    bytes_accessed += (N * ho * wo * cin_sc * sc_x.dtype.itemsize
                       + w_sc.size * w_sc.dtype.itemsize + b_sc.size * 4)
  elif residual is not None:
    mode = "add"
    inputs.append(residual)
    in_specs.append(pl.BlockSpec((None, rows, Cout_p), lambda n, r: (n, r, 0)))
    bytes_accessed += residual.size * residual.dtype.itemsize

  kernel = functools.partial(
      _conv_bn_kernel, ksize=ksize, stride=stride, trows=trows, wo=wo,
      relu=relu, mode=mode, sc_from_phase=sc_from_phase, use_patch=use_patch)

  scratch = ([pltpu.VMEM((rows, ksize * ksize * Cin_p), phases.dtype)]
             if use_patch else [])

  return pl.pallas_call(
      kernel,
      out_shape=jax.ShapeDtypeStruct((N, ho * wo, Cout_p), out_dtype),
      grid=grid,
      in_specs=in_specs,
      out_specs=pl.BlockSpec((None, rows, Cout_p), lambda n, r: (n, r, 0)),
      scratch_shapes=scratch,
      compiler_params=pltpu.CompilerParams(
          dimension_semantics=("parallel", "parallel"),
          vmem_limit_bytes=_vmem_limit_bytes()),
      cost_estimate=pl.CostEstimate(flops=int(flops), transcendentals=0,
                                    bytes_accessed=int(bytes_accessed)),
  )(*inputs)


def _fold_bn(bn, cout_p, eps=1e-5):
  """Returns (scale (Cout,) f32 to fold into weights, bias (1, Cout_p) f32)."""
  gamma, beta, mean, var = bn
  scale = (gamma / jnp.sqrt(var + eps)).astype(jnp.float32)
  bias = (beta - mean * scale).astype(jnp.float32)
  bias = jnp.pad(bias, (0, cout_p - bias.shape[0])).reshape(1, cout_p)
  return scale, bias


def _prep_w(w, cin_p, cout_p, dtype, scale=None):
  """(kk, Cin, Cout) -> BN-scale-folded, zero-padded im2col (kk*Cin_p, Cout_p)."""
  kk, cin, cout = w.shape
  wf = w.astype(jnp.float32)
  if scale is not None:
    wf = wf * scale[None, None, :]            # fold BN scale in f32, then cast
  wp = jnp.zeros((kk, cin_p, cout_p), jnp.float32).at[:, :cin, :cout].set(wf)
  return wp.reshape(kk * cin_p, cout_p).astype(dtype)


def res_block_forward(x_nchw, params, stride, compute_dtype=jnp.bfloat16,
                      use_patch=None, row_tile_target=1024):
  """ResBlock forward. x_nchw: (N, Cin, H, W) as in PyTorch.

  Matmuls run in `compute_dtype` (bf16 by default) with f32 accumulation; the
  BN bias add, shortcut add and ReLU stay in f32. BN is eval-mode (folded
  running statistics). NOTE: at the network level keep activations
  channel-padded NHWC (and in compute_dtype) across consecutive blocks; the
  transposes / channel pad here only exist to match the PyTorch interface.
  """
  x = jnp.transpose(x_nchw, (0, 2, 3, 1))                # NCHW -> NHWC
  N, H, W, Cin = x.shape
  Cout = params["w1"].shape[-1]
  Cin_p = _round_up(Cin, _LANE)
  Cout_p = _round_up(Cout, _LANE)

  # lane-dense channels: zero-pad Cin to a multiple of 128, cast once.
  xc = jnp.pad(x, ((0, 0), (0, 0), (0, 0), (0, Cin_p - Cin))).astype(compute_dtype)

  s1, b1 = _fold_bn(params["bn1"], Cout_p)
  w1 = _prep_w(params["w1"], Cin_p, Cout_p, compute_dtype, scale=s1)
  ph1, Ho, Wo = _space_to_depth(xc, 3, stride, 1)
  # inter-conv intermediate emitted in compute_dtype (halves its HBM traffic)
  out1 = conv_bn(ph1, w1, b1, ksize=3, stride=stride, ho=Ho, wo=Wo, relu=True,
                 out_dtype=compute_dtype, use_patch=use_patch,
                 row_tile_target=row_tile_target)         # (N, Ho*Wo, Cout_p)

  s2, b2 = _fold_bn(params["bn2"], Cout_p)
  w2 = _prep_w(params["w2"], Cout_p, Cout_p, compute_dtype, scale=s2)
  ph2, _, _ = _space_to_depth(out1.reshape(N, Ho, Wo, Cout_p), 3, 1, 1)

  if stride != 1 or Cin != Cout:
    # projection shortcut (1x1/s conv + BN) fused into the second conv kernel.
    ssc, bsc = _fold_bn(params["bn_sc"], Cout_p)
    w_sc = _prep_w(params["w_sc"], Cin_p, Cout_p, compute_dtype, scale=ssc)
    if stride == 1:
      shortcut = (xc.reshape(N, H * W, Cin_p), w_sc, bsc, False, 0)
    else:
      # x[:, ::s, ::s, :] is exactly phase (pad % s, pad % s) of ph1 -- reuse
      # it straight from HBM instead of materializing a strided slice.
      sc_q = (1 % stride) * stride + (1 % stride)
      shortcut = (ph1, w_sc, bsc, True, sc_q)
    out = conv_bn(ph2, w2, b2, ksize=3, stride=1, ho=Ho, wo=Wo, relu=True,
                  shortcut=shortcut, out_dtype=jnp.float32,
                  use_patch=use_patch, row_tile_target=row_tile_target)
  else:
    # identity shortcut fused as a residual add in the second conv kernel.
    out = conv_bn(ph2, w2, b2, ksize=3, stride=1, ho=Ho, wo=Wo, relu=True,
                  residual=xc.reshape(N, H * W, Cout_p),
                  out_dtype=jnp.float32, use_patch=use_patch,
                  row_tile_target=row_tile_target)

  out = out.reshape(N, Ho, Wo, Cout_p)[..., :Cout]        # free metadata reshape
  return jnp.transpose(out, (0, 3, 1, 2))                 # NHWC -> NCHW


# ---------------- pure-JAX reference for correctness check ----------------
def ref_res_block(x_nchw, params, stride, eps=1e-5):
  x = jnp.transpose(x_nchw, (0, 2, 3, 1))

  def conv(y, w, s, pad, k):
    w4 = w.reshape(k, k, w.shape[1], w.shape[2])
    return jax.lax.conv_general_dilated(
        y, w4, (s, s), [(pad, pad), (pad, pad)],
        dimension_numbers=("NHWC", "HWIO", "NHWC"),
        precision=jax.lax.Precision.HIGHEST)

  def bn(y, p):
    g, b, m, v = p
    return (y - m) / jnp.sqrt(v + eps) * g + b

  Cin, Cout = x.shape[-1], params["w1"].shape[-1]
  out = jax.nn.relu(bn(conv(x, params["w1"], stride, 1, 3), params["bn1"]))
  out = bn(conv(out, params["w2"], 1, 1, 3), params["bn2"])
  if stride != 1 or Cin != Cout:
    sc = bn(conv(x, params["w_sc"], stride, 0, 1), params["bn_sc"])
  else:
    sc = x
  out = jax.nn.relu(out + sc)
  return jnp.transpose(out, (0, 3, 1, 2))


if __name__ == "__main__":
  def bn_params(k, c):
    k1, k2, k3, k4 = jax.random.split(k, 4)
    gamma = 1.0 + 0.1 * jax.random.normal(k1, (c,), jnp.float32)
    beta = 0.1 * jax.random.normal(k2, (c,), jnp.float32)
    mean = 0.1 * jax.random.normal(k3, (c,), jnp.float32)
    var = jax.random.uniform(k4, (c,), jnp.float32, minval=0.5, maxval=1.5)
    return (gamma, beta, mean, var)

  def make_params(key, cin, cout):
    ks = jax.random.split(key, 6)
    return {
        "w1": 0.1 * jax.random.normal(ks[0], (9, cin, cout), jnp.float32),
        "bn1": bn_params(ks[1], cout),
        "w2": 0.1 * jax.random.normal(ks[2], (9, cout, cout), jnp.float32),
        "bn2": bn_params(ks[3], cout),
        "w_sc": 0.1 * jax.random.normal(ks[4], (1, cin, cout), jnp.float32),
        "bn_sc": bn_params(ks[5], cout),
    }

  key = jax.random.PRNGKey(0)
  kp1, kp2, kx1, kx2 = jax.random.split(key, 4)

  # Config A: projection shortcut (stride=2, channel change) -- the shortcut
  # reuses a phase of conv1's space-to-depth tensor.
  N, Cin, Cout, H, W, stride = 2, 4, 8, 16, 16, 2
  params_a = make_params(kp1, Cin, Cout)
  x_a = jax.random.normal(kx1, (N, Cin, H, W), jnp.float32)   # NCHW like PyTorch
  ref_a = jax.block_until_ready(ref_res_block(x_a, params_a, stride))

  y_a = jax.block_until_ready(
      res_block_forward(x_a, params_a, stride, compute_dtype=jnp.float32))
  assert y_a.shape == (N, Cout, H // stride, W // stride), y_a.shape
  np.testing.assert_allclose(np.asarray(y_a), np.asarray(ref_a),
                             atol=2e-3, rtol=2e-3)

  # Config A with the fat-K im2col patch path forced (wide-Cout v6e/v7x path).
  y_a_patch = jax.block_until_ready(
      res_block_forward(x_a, params_a, stride, compute_dtype=jnp.float32,
                        use_patch=True))
  np.testing.assert_allclose(np.asarray(y_a_patch), np.asarray(ref_a),
                             atol=2e-3, rtol=2e-3)

  # Config B: identity shortcut (stride=1, same channels) with a small row-tile
  # target -> exercises the multi-row-tile grid + fused residual-add path.
  params_b = make_params(kp2, Cout, Cout)
  x_b = jax.random.normal(kx2, (N, Cout, H, W), jnp.float32)
  y_b = jax.block_until_ready(
      res_block_forward(x_b, params_b, 1, compute_dtype=jnp.float32,
                        row_tile_target=64))
  ref_b = jax.block_until_ready(ref_res_block(x_b, params_b, 1))
  assert y_b.shape == (N, Cout, H, W), y_b.shape
  np.testing.assert_allclose(np.asarray(y_b), np.asarray(ref_b),
                             atol=2e-3, rtol=2e-3)

  # Config C: stride=1 but Cin != Cout -> projection shortcut on the flat
  # (non-phase) path.
  y_c = jax.block_until_ready(
      res_block_forward(x_a, params_a, 1, compute_dtype=jnp.float32))
  ref_c = jax.block_until_ready(ref_res_block(x_a, params_a, 1))
  assert y_c.shape == (N, Cout, H, W), y_c.shape
  np.testing.assert_allclose(np.asarray(y_c), np.asarray(ref_c),
                             atol=2e-3, rtol=2e-3)

  # Config A on the default bf16 matmul path (f32 accumulation); loose
  # tolerance only because of bf16 input/weight rounding.
  y_bf16 = jax.block_until_ready(res_block_forward(x_a, params_a, stride))
  np.testing.assert_allclose(np.asarray(y_bf16), np.asarray(ref_a),
                             atol=1e-1, rtol=1e-1)

  print("KERNEL_OK")
</pallas_src>

<mosaic_0001>
module attributes {stable_mosaic.version = 11 : i64} {
  func.func @_conv_bn_kernel(%arg0: i32, %arg1: i32, %arg2: memref<1x4x9x9x128xf32, #tpu.memory_space<vmem>>, %arg3: memref<1152x128xf32, #tpu.memory_space<vmem>>, %arg4: memref<1x128xf32, #tpu.memory_space<vmem>>, %arg5: memref<1x64x128xf32, #tpu.memory_space<vmem>>) attributes {dimension_semantics = [#tpu.dimension_semantics<parallel>, #tpu.dimension_semantics<parallel>], iteration_bounds = array<i64: 2, 1>, scalar_prefetch = 0 : i64, scratch_operands = 0 : i64, tpu.core_type = #tpu.core_type<tc>, window_params = [{transform_indices = @transform_0, window_bounds = array<i64: 1, 4, 9, 9, 128>}, {pipeline_mode = #tpu.pipeline_mode<synchronous>, transform_indices = @transform_1, window_bounds = array<i64: 1152, 128>}, {pipeline_mode = #tpu.pipeline_mode<synchronous>, transform_indices = @transform_2, window_bounds = array<i64: 1, 128>}, {transform_indices = @transform_3, window_bounds = array<i64: 1, 64, 128>}]} {
    %c8_i32 = arith.constant 8 : i32
    %0 = arith.muli %arg1, %c8_i32 : i32
    %1 = tpu.assume_multiple %0, 8 : i32
    %c0_i32 = arith.constant 0 : i32
    %2 = arith.addi %1, %c0_i32 : i32
    %c0 = arith.constant 0 : index
    %c0_0 = arith.constant 0 : index
    %3 = arith.index_cast %2 : i32 to index
    %c0_1 = arith.constant 0 : index
    %c0_2 = arith.constant 0 : index
    %4 = vector.load %arg2[%c0, %c0_0, %3, %c0_1, %c0_2] : memref<1x4x9x9x128xf32, #tpu.memory_space<vmem>>, vector<1x1x8x8x128xf32>
    %5 = vector.shape_cast %4 : vector<1x1x8x8x128xf32> to vector<8x8x128xf32>
    %6 = vector.shape_cast %5 : vector<8x8x128xf32> to vector<64x128xf32>
    %c0_3 = arith.constant 0 : index
    %c0_4 = arith.constant 0 : index
    %7 = vector.load %arg3[%c0_3, %c0_4] : memref<1152x128xf32, #tpu.memory_space<vmem>>, vector<128x128xf32>
    %cst = arith.constant dense<0.000000e+00> : vector<64x128xf32>
    %8 = tpu.matmul %6, %7, %cst {dimension_numbers = #tpu.dot_dimension_numbers<[1], [0], [0], [1], [0, 0, 1, 1], [], []>} : vector<64x128xf32>, vector<128x128xf32>, vector<64x128xf32> -> vector<64x128xf32>
    %c0_i32_5 = arith.constant 0 : i32
    %9 = arith.addi %1, %c0_i32_5 : i32
    %c0_6 = arith.constant 0 : index
    %c1 = arith.constant 1 : index
    %10 = arith.index_cast %9 : i32 to index
    %c0_7 = arith.constant 0 : index
    %c0_8 = arith.constant 0 : index
    %11 = vector.load %arg2[%c0_6, %c1, %10, %c0_7, %c0_8] : memref<1x4x9x9x128xf32, #tpu.memory_space<vmem>>, vector<1x1x8x8x128xf32>
    %12 = vector.shape_cast %11 : vector<1x1x8x8x128xf32> to vector<8x8x128xf32>
    %13 = vector.shape_cast %12 : vector<8x8x128xf32> to vector<64x128xf32>
    %c128 = arith.constant 128 : index
    %c0_9 = arith.constant 0 : index
    %14 = vector.load %arg3[%c128, %c0_9] : memref<1152x128xf32, #tpu.memory_space<vmem>>, vector<128x128xf32>
    %cst_10 = arith.constant dense<0.000000e+00> : vector<64x128xf32>
    %15 = tpu.matmul %13, %14, %cst_10 {dimension_numbers = #tpu.dot_dimension_numbers<[1], [0], [0], [1], [0, 0, 1, 1], [], []>} : vector<64x128xf32>, vector<128x128xf32>, vector<64x128xf32> -> vector<64x128xf32>
    %16 = arith.addf %8, %15 : vector<64x128xf32>
    %c0_i32_11 = arith.constant 0 : i32
    %17 = arith.addi %1, %c0_i32_11 : i32
    %c0_12 = arith.constant 0 : index
    %c0_13 = arith.constant 0 : index
    %18 = arith.index_cast %17 : i32 to index
    %c1_14 = arith.constant 1 : index
    %c0_15 = arith.constant 0 : index
    %19 = vector.load %arg2[%c0_12, %c0_13, %18, %c1_14, %c0_15] : memref<1x4x9x9x128xf32, #tpu.memory_space<vmem>>, vector<1x1x8x8x128xf32>
    %20 = vector.shape_cast %19 : vector<1x1x8x8x128xf32> to vector<8x8x128xf32>
    %21 = vector.shape_cast %20 : vector<8x8x128xf32> to vector<64x128xf32>
    %c256 = arith.constant 256 : index
    %c0_16 = arith.constant 0 : index
    %22 = vector.load %arg3[%c256, %c0_16] : memref<1152x128xf32, #tpu.memory_space<vmem>>, vector<128x128xf32>
    %cst_17 = arith.constant dense<0.000000e+00> : vector<64x128xf32>
    %23 = tpu.matmul %21, %22, %cst_17 {dimension_numbers = #tpu.dot_dimension_numbers<[1], [0], [0], [1], [0, 0, 1, 1], [], []>} : vector<64x128xf32>, vector<128x128xf32>, vector<64x128xf32> -> vector<64x128xf32>
    %24 = arith.addf %16, %23 : vector<64x128xf32>
    %c0_i32_18 = arith.constant 0 : i32
    %25 = arith.addi %1, %c0_i32_18 : i32
    %c0_19 = arith.constant 0 : index
    %c2 = arith.constant 2 : index
    %26 = arith.index_cast %25 : i32 to index
    %c0_20 = arith.constant 0 : index
    %c0_21 = arith.constant 0 : index
    %27 = vector.load %arg2[%c0_19, %c2, %26, %c0_20, %c0_21] : memref<1x4x9x9x128xf32, #tpu.memory_space<vmem>>, vector<1x1x8x8x128xf32>
    %28 = vector.shape_cast %27 : vector<1x1x8x8x128xf32> to vector<8x8x128xf32>
    %29 = vector.shape_cast %28 : vector<8x8x128xf32> to vector<64x128xf32>
    %c384 = arith.constant 384 : index
    %c0_22 = arith.constant 0 : index
    %30 = vector.load %arg3[%c384, %c0_22] : memref<1152x128xf32, #tpu.memory_space<vmem>>, vector<128x128xf32>
    %cst_23 = arith.constant dense<0.000000e+00> : vector<64x128xf32>
    %31 = tpu.matmul %29, %30, %cst_23 {dimension_numbers = #tpu.dot_dimension_numbers<[1], [0], [0], [1], [0, 0, 1, 1], [], []>} : vector<64x128xf32>, vector<128x128xf32>, vector<64x128xf32> -> vector<64x128xf32>
    %32 = arith.addf %24, %31 : vector<64x128xf32>
    %c0_i32_24 = arith.constant 0 : i32
    %33 = arith.addi %1, %c0_i32_24 : i32
    %c0_25 = arith.constant 0 : index
    %c3 = arith.constant 3 : index
    %34 = arith.index_cast %33 : i32 to index
    %c0_26 = arith.constant 0 : index
    %c0_27 = arith.constant 0 : index
    %35 = vector.load %arg2[%c0_25, %c3, %34, %c0_26, %c0_27] : memref<1x4x9x9x128xf32, #tpu.memory_space<vmem>>, vector<1x1x8x8x128xf32>
    %36 = vector.shape_cast %35 : vector<1x1x8x8x128xf32> to vector<8x8x128xf32>
    %37 = vector.shape_cast %36 : vector<8x8x128xf32> to vector<64x128xf32>
    %c512 = arith.constant 512 : index
    %c0_28 = arith.constant 0 : index
    %38 = vector.load %arg3[%c512, %c0_28] : memref<1152x128xf32, #tpu.memory_space<vmem>>, vector<128x128xf32>
    %cst_29 = arith.constant dense<0.000000e+00> : vector<64x128xf32>
    %39 = tpu.matmul %37, %38, %cst_29 {dimension_numbers = #tpu.dot_dimension_numbers<[1], [0], [0], [1], [0, 0, 1, 1], [], []>} : vector<64x128xf32>, vector<128x128xf32>, vector<64x128xf32> -> vector<64x128xf32>
    %40 = arith.addf %32, %39 : vector<64x128xf32>
    %c0_i32_30 = arith.constant 0 : i32
    %41 = arith.addi %1, %c0_i32_30 : i32
    %c0_31 = arith.constant 0 : index
    %c2_32 = arith.constant 2 : index
    %42 = arith.index_cast %41 : i32 to index
    %c1_33 = arith.constant 1 : index
    %c0_34 = arith.constant 0 : index
    %43 = vector.load %arg2[%c0_31, %c2_32, %42, %c1_33, %c0_34] : memref<1x4x9x9x128xf32, #tpu.memory_space<vmem>>, vector<1x1x8x8x128xf32>
    %44 = vector.shape_cast %43 : vector<1x1x8x8x128xf32> to vector<8x8x128xf32>
    %45 = vector.shape_cast %44 : vector<8x8x128xf32> to vector<64x128xf32>
    %c640 = arith.constant 640 : index
    %c0_35 = arith.constant 0 : index
    %46 = vector.load %arg3[%c640, %c0_35] : memref<1152x128xf32, #tpu.memory_space<vmem>>, vector<128x128xf32>
    %cst_36 = arith.constant dense<0.000000e+00> : vector<64x128xf32>
    %47 = tpu.matmul %45, %46, %cst_36 {dimension_numbers = #tpu.dot_dimension_numbers<[1], [0], [0], [1], [0, 0, 1, 1], [], []>} : vector<64x128xf32>, vector<128x128xf32>, vector<64x128xf32> -> vector<64x128xf32>
    %48 = arith.addf %40, %47 : vector<64x128xf32>
    %c1_i32 = arith.constant 1 : i32
    %49 = arith.addi %1, %c1_i32 : i32
    %c0_37 = arith.constant 0 : index
    %c0_38 = arith.constant 0 : index
    %50 = arith.index_cast %49 : i32 to index
    %c0_39 = arith.constant 0 : index
    %c0_40 = arith.constant 0 : index
    %51 = vector.load %arg2[%c0_37, %c0_38, %50, %c0_39, %c0_40] : memref<1x4x9x9x128xf32, #tpu.memory_space<vmem>>, vector<1x1x8x8x128xf32>
    %52 = vector.shape_cast %51 : vector<1x1x8x8x128xf32> to vector<8x8x128xf32>
    %53 = vector.shape_cast %52 : vector<8x8x128xf32> to vector<64x128xf32>
    %c768 = arith.constant 768 : index
    %c0_41 = arith.constant 0 : index
    %54 = vector.load %arg3[%c768, %c0_41] : memref<1152x128xf32, #tpu.memory_space<vmem>>, vector<128x128xf32>
    %cst_42 = arith.constant dense<0.000000e+00> : vector<64x128xf32>
    %55 = tpu.matmul %53, %54, %cst_42 {dimension_numbers = #tpu.dot_dimension_numbers<[1], [0], [0], [1], [0, 0, 1, 1], [], []>} : vector<64x128xf32>, vector<128x128xf32>, vector<64x128xf32> -> vector<64x128xf32>
    %56 = arith.addf %48, %55 : vector<64x128xf32>
    %c1_i32_43 = arith.constant 1 : i32
    %57 = arith.addi %1, %c1_i32_43 : i32
    %c0_44 = arith.constant 0 : index
    %c1_45 = arith.constant 1 : index
    %58 = arith.index_cast %57 : i32 to index
    %c0_46 = arith.constant 0 : index
    %c0_47 = arith.constant 0 : index
    %59 = vector.load %arg2[%c0_44, %c1_45, %58, %c0_46, %c0_47] : memref<1x4x9x9x128xf32, #tpu.memory_space<vmem>>, vector<1x1x8x8x128xf32>
    %60 = vector.shape_cast %59 : vector<1x1x8x8x128xf32> to vector<8x8x128xf32>
    %61 = vector.shape_cast %60 : vector<8x8x128xf32> to vector<64x128xf32>
    %c896 = arith.constant 896 : index
    %c0_48 = arith.constant 0 : index
    %62 = vector.load %arg3[%c896, %c0_48] : memref<1152x128xf32, #tpu.memory_space<vmem>>, vector<128x128xf32>
    %cst_49 = arith.constant dense<0.000000e+00> : vector<64x128xf32>
    %63 = tpu.matmul %61, %62, %cst_49 {dimension_numbers = #tpu.dot_dimension_numbers<[1], [0], [0], [1], [0, 0, 1, 1], [], []>} : vector<64x128xf32>, vector<128x128xf32>, vector<64x128xf32> -> vector<64x128xf32>
    %64 = arith.addf %56, %63 : vector<64x128xf32>
    %c1_i32_50 = arith.constant 1 : i32
    %65 = arith.addi %1, %c1_i32_50 : i32
    %c0_51 = arith.constant 0 : index
    %c0_52 = arith.constant 0 : index
    %66 = arith.index_cast %65 : i32 to index
    %c1_53 = arith.constant 1 : index
    %c0_54 = arith.constant 0 : index
    %67 = vector.load %arg2[%c0_51, %c0_52, %66, %c1_53, %c0_54] : memref<1x4x9x9x128xf32, #tpu.memory_space<vmem>>, vector<1x1x8x8x128xf32>
    %68 = vector.shape_cast %67 : vector<1x1x8x8x128xf32> to vector<8x8x128xf32>
    %69 = vector.shape_cast %68 : vector<8x8x128xf32> to vector<64x128xf32>
    %c1024 = arith.constant 1024 : index
    %c0_55 = arith.constant 0 : index
    %70 = vector.load %arg3[%c1024, %c0_55] : memref<1152x128xf32, #tpu.memory_space<vmem>>, vector<128x128xf32>
    %cst_56 = arith.constant dense<0.000000e+00> : vector<64x128xf32>
    %71 = tpu.matmul %69, %70, %cst_56 {dimension_numbers = #tpu.dot_dimension_numbers<[1], [0], [0], [1], [0, 0, 1, 1], [], []>} : vector<64x128xf32>, vector<128x128xf32>, vector<64x128xf32> -> vector<64x128xf32>
    %72 = arith.addf %64, %71 : vector<64x128xf32>
    %c0_57 = arith.constant 0 : index
    %c0_58 = arith.constant 0 : index
    %73 = vector.load %arg4[%c0_57, %c0_58] : memref<1x128xf32, #tpu.memory_space<vmem>>, vector<1x128xf32>
    %74 = vector.broadcast %73 : vector<1x128xf32> to vector<64x128xf32>
    %75 = arith.addf %72, %74 : vector<64x128xf32>
    %cst_59 = arith.constant 0.000000e+00 : f32
    %76 = vector.broadcast %cst_59 : f32 to vector<64x128xf32>
    %77 = arith.maximumf %75, %76 : vector<64x128xf32>
    %c0_60 = arith.constant 0 : index
    %c0_61 = arith.constant 0 : index
    %c0_62 = arith.constant 0 : index
    %78 = vector.load %arg5[%c0_60, %c0_61, %c0_62] : memref<1x64x128xf32, #tpu.memory_space<vmem>>, vector<1x64x128xf32>
    %79 = vector.shape_cast %78 : vector<1x64x128xf32> to vector<64x128xf32>
    %80 = vector.shape_cast %77 : vector<64x128xf32> to vector<1x64x128xf32>
    tpu.vector_store %arg5[%c0_60, %c0_61, %c0_62], %80 {strides = array<i32>} : memref<1x64x128xf32, #tpu.memory_space<vmem>>, vector<1x64x128xf32>,
    return
  }
  func.func @transform_0(%arg0: i32, %arg1: i32) -> (i32, i32, i32, i32, i32) {
    %c0_i32 = arith.constant 0 : i32
    %c0_i32_0 = arith.constant 0 : i32
    %c0_i32_1 = arith.constant 0 : i32
    %c0_i32_2 = arith.constant 0 : i32
    %c0_i32_3 = arith.constant 0 : i32
    return %arg0, %c0_i32, %c0_i32_0, %c0_i32_1, %c0_i32_2 : i32, i32, i32, i32, i32
  }
  func.func @transform_1(%arg0: i32, %arg1: i32) -> (i32, i32) {
    %c0_i32 = arith.constant 0 : i32
    %c0_i32_0 = arith.constant 0 : i32
    %c0_i32_1 = arith.constant 0 : i32
    return %c0_i32, %c0_i32_0 : i32, i32
  }
  func.func @transform_2(%arg0: i32, %arg1: i32) -> (i32, i32) {
    %c0_i32 = arith.constant 0 : i32
    %c0_i32_0 = arith.constant 0 : i32
    %c0_i32_1 = arith.constant 0 : i32
    return %c0_i32, %c0_i32_0 : i32, i32
  }
  func.func @transform_3(%arg0: i32, %arg1: i32) -> (i32, i32, i32) {
    %c0_i32 = arith.constant 0 : i32
    %c0_i32_0 = arith.constant 0 : i32
    return %arg0, %arg1, %c0_i32 : i32, i32, i32
  }
}

</mosaic_0001>

<llo_original>
// kernel: tpu_custom_call.1
$region0: #{tpu_custom_call.1}
  #allocation0 [shape = 'u32[]', space=smem, size = 0x4, offset = 0x4, fixed_abs, tag = 'smem constant byte address 0x4 - core index']
  #allocation1 [shape = 'u32[72,128]{1,0:T(1,128)}', space=vmem, size = 0x9000, scoped, tag = 'internal scratch']
  %s0 = inlined_call_operand.vmem [shape: f32[2,4,9,9,128], index: 0, kind: input, shape index: {}]
  %s1 = inlined_call_operand.vmem [shape: f32[1152,128], index: 1, kind: input, shape index: {}]
  %s2 = inlined_call_operand.vmem [shape: f32[1,128], index: 2, kind: input, shape index: {}]
  %s3 = inlined_call_operand.hbm [shape: f32[2,64,128], index: 3, kind: output, shape index: {}]
  %s4 = sld [smem:[#allocation0]]
  $region45: #{tpu_custom_call.1} parent=0
    _
  %s6 = ssub.s32 1, %s4
  %s7 = scalar_select 0, %s6, %s4
  $region1: #{tpu_custom_call.1} parent=0
    #allocation2 [shape = 'u8[65536]{0}', space=vmem, size = 0x10000, scoped, tag = 'output window, operand 0']
    #allocation3 [shape = 's32[2]{0}', space=sflag, size = 0x8, scoped, tag = 'scoped memory for tpu_custom_call.1']
    %8 = vsyncpa [#allocation3], 0
    %s9 = scalar_lea.sflag [#allocation3], 1
    %10 = vsyncpa %s9, 0
    loop: start=0, step=1, limit=4
    $region2: #{tpu_custom_call.1} parent=1 // loop_pre_header
      _
    $region3: #{tpu_custom_call.1} parent=1 // loop_header
      %s12 = sphi 0, %s16
      %p13 = scmp.ge.s32.totalorder %s12, 4
      %s19 = sphi 0, %s31
      %s20 = sphi 0, %s27
      %s21 = sphi 0, %s19
      %s22 = sphi 0, %s20
      %s23 = sphi 0, %s21
      %s24 = sphi 0, %s22
      %s34 = sphi 0, %s36
      %s37 = sphi 0, %s34
      %s38 = sphi 0, %s37
      %s54 = sphi 0, %s38
      %s58 = sphi 0, %s58
      %s60 = sphi 0, %s58
      %s61 = sphi 0, %s60
      %s75 = sphi 0, %s61
      %s79 = sphi 0, %s79
      %s81 = sphi 0, %s79
      %s82 = sphi 0, %s81
      %s96 = sphi 0, %s82
      %s104 = sphi 0, %s106
      %s107 = sphi 0, %s104
      %s108 = sphi 0, %s107
      %s124 = sphi 0, %s108
    $region4: #{tpu_custom_call.1} parent=1 // loop_header_branch
      %15 = sbr.rel (%p13) target = $region8
    $region5: #{tpu_custom_call.1} parent=1 // loop_body
      %s17 = ssub.s32 %s12, 1
      %s18 = ssub.s32 %s12, 2
      %s25 = sadd.s32 1, %s20
      %p26 = scmp.ge.s32.totalorder %s25, 1
      %s27 = scalar_select %p26, 0, %s25
      %s28 = sadd.s32 1, %s19
      %s29 = scalar_select %p26, %s28, %s19
      %p30 = scmp.ge.s32.totalorder %s29, 2
      %s31 = scalar_select %p30, 0, %s29
      %s32 = ssub.s32 %s19, %s31
      %p33 = scmp.eq.s32.totalorder %s32, 0
      %s35 = sadd.s32 %s34, 1
      %s36 = scalar_select %p33, %s34, %s35
      %p39 = pneg %p33
      %p40 = scmp.eq.s32.totalorder %s12, 1
      %p41 = por %p39, %p40
      %p42 = scmp.ne.s32.totalorder %s34, %s37
      %p43 = scmp.eq.s32.totalorder %s12, 0
      %p44 = por %p42, %p43
      %p45 = scmp.ne.s32.totalorder %s34, %s37
      %p46 = scmp.eq.s32.totalorder %s17, 1
      %p47 = por %p45, %p46
      %p48 = scmp.ne.s32.totalorder %s37, %s38
      %p49 = scmp.eq.s32.totalorder %s17, 0
      %p50 = por %p48, %p49
      %p51 = scmp.ne.s32.totalorder %s37, %s38
      %p52 = scmp.eq.s32.totalorder %s18, 1
      %p53 = por %p51, %p52
      %p55 = scmp.ne.s32.totalorder %s38, %s54
      %p56 = scmp.eq.s32.totalorder %s18, 0
      %p57 = por %p55, %p56
      %s59 = sadd.s32 %s58, 1
      %p62 = scmp.eq.s32.totalorder %s12, 1
      %p63 = scmp.ne.s32.totalorder %s58, %s60
      %p64 = scmp.eq.s32.totalorder %s12, 0
      %p65 = por %p63, %p64
      %p66 = scmp.ne.s32.totalorder %s58, %s60
      %p67 = scmp.eq.s32.totalorder %s17, 1
      %p68 = por %p66, %p67
      %p69 = scmp.ne.s32.totalorder %s60, %s61
      %p70 = scmp.eq.s32.totalorder %s17, 0
      %p71 = por %p69, %p70
      %p72 = scmp.ne.s32.totalorder %s60, %s61
      %p73 = scmp.eq.s32.totalorder %s18, 1
      %p74 = por %p72, %p73
      %p76 = scmp.ne.s32.totalorder %s61, %s75
      %p77 = scmp.eq.s32.totalorder %s18, 0
      %p78 = por %p76, %p77
      %s80 = sadd.s32 %s79, 1
      %p83 = scmp.eq.s32.totalorder %s12, 1
      %p84 = scmp.ne.s32.totalorder %s79, %s81
      %p85 = scmp.eq.s32.totalorder %s12, 0
      %p86 = por %p84, %p85
      %p87 = scmp.ne.s32.totalorder %s79, %s81
      %p88 = scmp.eq.s32.totalorder %s17, 1
      %p89 = por %p87, %p88
      %p90 = scmp.ne.s32.totalorder %s81, %s82
      %p91 = scmp.eq.s32.totalorder %s17, 0
      %p92 = por %p90, %p91
      %p93 = scmp.ne.s32.totalorder %s81, %s82
      %p94 = scmp.eq.s32.totalorder %s18, 1
      %p95 = por %p93, %p94
      %p97 = scmp.ne.s32.totalorder %s82, %s96
      %p98 = scmp.eq.s32.totalorder %s18, 0
      %p99 = por %p97, %p98
      %s100 = ssub.s32 %s19, %s31
      %s101 = ssub.s32 %s20, %s27
      %s102 = sor.u32 %s100, %s101
      %p103 = scmp.eq.s32.totalorder %s102, 0
      %s105 = sadd.s32 %s104, 1
      %s106 = scalar_select %p103, %s104, %s105
      %p109 = pneg %p103
      %p110 = scmp.eq.s32.totalorder %s12, 1
      %p111 = por %p109, %p110
      %p112 = scmp.ne.s32.totalorder %s104, %s107
      %p113 = scmp.eq.s32.totalorder %s12, 0
      %p114 = por %p112, %p113
      %p115 = scmp.ne.s32.totalorder %s104, %s107
      %p116 = scmp.eq.s32.totalorder %s17, 1
      %p117 = por %p115, %p116
      %p118 = scmp.ne.s32.totalorder %s107, %s108
      %p119 = scmp.eq.s32.totalorder %s17, 0
      %p120 = por %p118, %p119
      %p121 = scmp.ne.s32.totalorder %s107, %s108
      %p122 = scmp.eq.s32.totalorder %s18, 1
      %p123 = por %p121, %p122
      %p125 = scmp.ne.s32.totalorder %s108, %s124
      %p126 = scmp.eq.s32.totalorder %s18, 0
      %p127 = por %p125, %p126
      %p128 = scmp.le.s32.totalorder 1, %s12
      %p129 = scmp.lt.s32.totalorder %s12, 3
      %p130 = pnand %p128, %p129
      %p131 = pneg %p130
      // Predicated region
      $region9: #{tpu_custom_call.1} parent=5 // pred_check
        _
      $region10: #{tpu_custom_call.1} parent=5 // pred_check_branch
        %133 = sbr.rel (%p130) target = $region12
      $region11: #{tpu_custom_call.1} parent=5 // pred_region
        %s134 = ssub.s32 %s12, 1
        // Predicated region
        $region13: #{tpu_custom_call.1} parent=11 // pred_check
          %p135 = pneg %p71
        $region14: #{tpu_custom_call.1} parent=11 // pred_check_branch
          %137 = sbr.rel (%p135) target = $region16
        $region15: #{tpu_custom_call.1} parent=11 // pred_region
          _
        $region16: #{tpu_custom_call.1} parent=11 // pred_fallthru
          _
        // Predicated region
        $region17: #{tpu_custom_call.1} parent=11 // pred_check
          %p138 = pneg %p92
        $region18: #{tpu_custom_call.1} parent=11 // pred_check_branch
          %140 = sbr.rel (%p138) target = $region20
        $region19: #{tpu_custom_call.1} parent=11 // pred_region
          _
        $region20: #{tpu_custom_call.1} parent=11 // pred_fallthru
          _
      $region12: #{tpu_custom_call.1} parent=5 // pred_fallthru
        _
      %p141 = scmp.lt.s32.totalorder %s12, 2
      // Predicated region
      $region21: #{tpu_custom_call.1} parent=5 // pred_check
        %p142 = pneg %p141
      $region22: #{tpu_custom_call.1} parent=5 // pred_check_branch
        %144 = sbr.rel (%p142) target = $region24
      $region23: #{tpu_custom_call.1} parent=5 // pred_region
        // Predicated region
        $region25: #{tpu_custom_call.1} parent=23 // pred_check
          %p145 = pneg %p44
        $region26: #{tpu_custom_call.1} parent=23 // pred_check_branch
          %147 = sbr.rel (%p145) target = $region28
        $region27: #{tpu_custom_call.1} parent=23 // pred_region
          %p148 = scmp.lt.s32.totalorder %s19, 1
          %s149 = scalar_select %p148, %s19, 1
          %s150 = smul.addr %s149, 72
          %s151 = smul.addr %s150, 8
          %s152 = scalar_lea.vmem %s0, %s151
        $region28: #{tpu_custom_call.1} parent=23 // pred_fallthru
          _
      $region24: #{tpu_custom_call.1} parent=5 // pred_fallthru
        _
      %p153 = scmp.le.s32.totalorder 1, %s12
      %p154 = scmp.lt.s32.totalorder %s12, 3
      %p155 = pnand %p153, %p154
      %p156 = pneg %p155
      // Predicated region
      $region29: #{tpu_custom_call.1} parent=5 // pred_check
        _
      $region30: #{tpu_custom_call.1} parent=5 // pred_check_branch
        %158 = sbr.rel (%p155) target = $region32
      $region31: #{tpu_custom_call.1} parent=5 // pred_region
        %s159 = ssub.s32 %s12, 1
        %p160 = scmp.lt.s32.totalorder %s21, 1
        %s161 = scalar_select %p160, %s21, 1
        %s162 = smul.addr %s161, 72
        %s163 = smul.addr %s162, 8
        %s164 = scalar_lea.vmem %s0, %s163
        %p165 = pneg %p50
        %p166 = pneg %p47
        %p167 = pneg %p71
        %p168 = pneg %p68
        %p169 = pneg %p92
        %p170 = pneg %p89
        %p171 = pneg %p120
        %p172 = pneg %p117
        %s173 = sand.u32 %s107, 1
        %s174 = scalar_lea.sflag [#allocation3], %s173
        %s175 = sand.u32 %s107, 1
        %s176 = smul.addr %s175, 64
        %s177 = scalar_lea.vmem [#allocation2], %s176
        %p178 = scmp.lt.s32.totalorder %s21, 1
        %s179 = scalar_select %p178, %s21, 1
        %s180 = smul.addr %s179, 72
        %s181 = smul.addr %s180, 8
        %s182 = scalar_lea.vmem %s0, %s181
        %s183 = smul.u32 8, %s22
        %s184 = smul.u32 %s22, 8
        %s185 = smul.u32 %s184, 16
        %s186 = scalar_lea.vmem %s182, %s185
        %v187 = vld [vmem:[%s186] sm:$0xff]
        %v188 = vld [vmem:[%s186 + $0x10] sm:$0xff]
        %v189 = vld [vmem:[%s186 + $0x20] sm:$0xff]
        %v190 = vld [vmem:[%s186 + $0x30] sm:$0xff]
        %v191 = vld [vmem:[%s186 + $0x40] sm:$0xff]
        %v192 = vld [vmem:[%s186 + $0x50] sm:$0xff]
        %v193 = vld [vmem:[%s186 + $0x60] sm:$0xff]
        %v194 = vld [vmem:[%s186 + $0x70] sm:$0xff]
        %v195 = vld [vmem:[%s1] sm:$0xff]
        %v196 = vld [vmem:[%s1 + $0x8] sm:$0xff]
        %v197 = vld [vmem:[%s1 + $0x10] sm:$0xff]
        %v198 = vld [vmem:[%s1 + $0x18] sm:$0xff]
        %v199 = vld [vmem:[%s1 + $0x20] sm:$0xff]
        %v200 = vld [vmem:[%s1 + $0x28] sm:$0xff]
        %v201 = vld [vmem:[%s1 + $0x30] sm:$0xff]
        %v202 = vld [vmem:[%s1 + $0x38] sm:$0xff]
        %v203 = vld [vmem:[%s1 + $0x40] sm:$0xff]
        %v204 = vld [vmem:[%s1 + $0x48] sm:$0xff]
        %v205 = vld [vmem:[%s1 + $0x50] sm:$0xff]
        %v206 = vld [vmem:[%s1 + $0x58] sm:$0xff]
        %v207 = vld [vmem:[%s1 + $0x60] sm:$0xff]
        %v208 = vld [vmem:[%s1 + $0x68] sm:$0xff]
        %v209 = vld [vmem:[%s1 + $0x70] sm:$0xff]
        %v210 = vld [vmem:[%s1 + $0x78] sm:$0xff]
        %s211 = sadd.s32 %s185, 144
        %s212 = scalar_lea.vmem %s182, %s211
        %v213 = vld [vmem:[%s212] sm:$0xff]
        %v214 = vld [vmem:[%s212 + $0x10] sm:$0xff]
        %v215 = vld [vmem:[%s212 + $0x20] sm:$0xff]
        %v216 = vld [vmem:[%s212 + $0x30] sm:$0xff]
        %v217 = vld [vmem:[%s212 + $0x40] sm:$0xff]
        %v218 = vld [vmem:[%s212 + $0x50] sm:$0xff]
        %v219 = vld [vmem:[%s212 + $0x60] sm:$0xff]
        %v220 = vld [vmem:[%s212 + $0x70] sm:$0xff]
        %v221 = vld [vmem:[%s1 + $0x80] sm:$0xff]
        %v222 = vld [vmem:[%s1 + $0x88] sm:$0xff]
        %v223 = vld [vmem:[%s1 + $0x90] sm:$0xff]
        %v224 = vld [vmem:[%s1 + $0x98] sm:$0xff]
        %v225 = vld [vmem:[%s1 + $0xa0] sm:$0xff]
        %v226 = vld [vmem:[%s1 + $0xa8] sm:$0xff]
        %v227 = vld [vmem:[%s1 + $0xb0] sm:$0xff]
        %v228 = vld [vmem:[%s1 + $0xb8] sm:$0xff]
        %v229 = vld [vmem:[%s1 + $0xc0] sm:$0xff]
        %v230 = vld [vmem:[%s1 + $0xc8] sm:$0xff]
        %v231 = vld [vmem:[%s1 + $0xd0] sm:$0xff]
        %v232 = vld [vmem:[%s1 + $0xd8] sm:$0xff]
        %v233 = vld [vmem:[%s1 + $0xe0] sm:$0xff]
        %v234 = vld [vmem:[%s1 + $0xe8] sm:$0xff]
        %v235 = vld [vmem:[%s1 + $0xf0] sm:$0xff]
        %v236 = vld [vmem:[%s1 + $0xf8] sm:$0xff]
        %237 = vmatpush.msra.mxu0 %v236
        %238 = vmatpush.msra.mxu0 %v235
        %239 = vmatpush.msra.mxu0 %v234
        %240 = vmatpush.msra.mxu0 %v233
        %241 = vmatpush.msra.mxu0 %v232
        %242 = vmatpush.msra.mxu0 %v231
        %243 = vmatpush.msra.mxu0 %v230
        %244 = vmatpush.msra.mxu0 %v229
        %245 = vmatpush.msra.mxu0 %v228
        %246 = vmatpush.msra.mxu0 %v227
        %247 = vmatpush.msra.mxu0 %v226
        %248 = vmatpush.msra.mxu0 %v225
        %249 = vmatpush.msra.mxu0 %v224
        %250 = vmatpush.msra.mxu0 %v223
        %251 = vmatpush.msra.mxu0 %v222
        %252 = vmatpush.msra.mxu0 %v221
        %253 = vmatmul.f32.gmra.mxu0 %v213
        %v254 = vpop.f32.mrf.mxu0
        %v255 = vadd.f32 0.0, %v254
        %256 = vmatmul.f32.gmra.mxu0 %v214
        %v257 = vpop.f32.mrf.mxu0
        %v258 = vadd.f32 0.0, %v257
        %259 = vmatmul.f32.gmra.mxu0 %v215
        %v260 = vpop.f32.mrf.mxu0
        %v261 = vadd.f32 0.0, %v260
        %262 = vmatmul.f32.gmra.mxu0 %v216
        %v263 = vpop.f32.mrf.mxu0
        %v264 = vadd.f32 0.0, %v263
        %265 = vmatmul.f32.gmra.mxu0 %v217
        %v266 = vpop.f32.mrf.mxu0
        %v267 = vadd.f32 0.0, %v266
        %268 = vmatmul.f32.gmra.mxu0 %v218
        %v269 = vpop.f32.mrf.mxu0
        %v270 = vadd.f32 0.0, %v269
        %271 = vmatmul.f32.gmra.mxu0 %v219
        %v272 = vpop.f32.mrf.mxu0
        %v273 = vadd.f32 0.0, %v272
        %274 = vmatmul.f32.gmra.mxu0 %v220
        %v275 = vpop.f32.mrf.mxu0
        %v276 = vadd.f32 0.0, %v275
        %277 = vdwg.mxu0
        %278 = vmatpush.msra.mxu0 %v210
        %279 = vmatpush.msra.mxu0 %v209
        %280 = vmatpush.msra.mxu0 %v208
        %281 = vmatpush.msra.mxu0 %v207
        %282 = vmatpush.msra.mxu0 %v206
        %283 = vmatpush.msra.mxu0 %v205
        %284 = vmatpush.msra.mxu0 %v204
        %285 = vmatpush.msra.mxu0 %v203
        %286 = vmatpush.msra.mxu0 %v202
        %287 = vmatpush.msra.mxu0 %v201
        %288 = vmatpush.msra.mxu0 %v200
        %289 = vmatpush.msra.mxu0 %v199
        %290 = vmatpush.msra.mxu0 %v198
        %291 = vmatpush.msra.mxu0 %v197
        %292 = vmatpush.msra.mxu0 %v196
        %293 = vmatpush.msra.mxu0 %v195
        %294 = vmatmul.f32.gmra.mxu0 %v187
        %v295 = vpop.f32.mrf.mxu0
        %v296 = vadd.f32 %v255, %v295
        %297 = vmatmul.f32.gmra.mxu0 %v188
        %v298 = vpop.f32.mrf.mxu0
        %v299 = vadd.f32 %v258, %v298
        %300 = vmatmul.f32.gmra.mxu0 %v189
        %v301 = vpop.f32.mrf.mxu0
        %v302 = vadd.f32 %v261, %v301
        %303 = vmatmul.f32.gmra.mxu0 %v190
        %v304 = vpop.f32.mrf.mxu0
        %v305 = vadd.f32 %v264, %v304
        %306 = vmatmul.f32.gmra.mxu0 %v191
        %v307 = vpop.f32.mrf.mxu0
        %v308 = vadd.f32 %v267, %v307
        %309 = vmatmul.f32.gmra.mxu0 %v192
        %v310 = vpop.f32.mrf.mxu0
        %v311 = vadd.f32 %v270, %v310
        %312 = vmatmul.f32.gmra.mxu0 %v193
        %v313 = vpop.f32.mrf.mxu0
        %v314 = vadd.f32 %v273, %v313
        %315 = vmatmul.f32.gmra.mxu0 %v194
        %v316 = vpop.f32.mrf.mxu0
        %v317 = vadd.f32 %v276, %v316
        %318 = vdwg.mxu0
        %v319 = vld [vmem:[%s186 + $0x1] sm:$0xff]
        %v320 = vld [vmem:[%s186 + $0x11] sm:$0xff]
        %v321 = vld [vmem:[%s186 + $0x21] sm:$0xff]
        %v322 = vld [vmem:[%s186 + $0x31] sm:$0xff]
        %v323 = vld [vmem:[%s186 + $0x41] sm:$0xff]
        %v324 = vld [vmem:[%s186 + $0x51] sm:$0xff]
        %v325 = vld [vmem:[%s186 + $0x61] sm:$0xff]
        %v326 = vld [vmem:[%s186 + $0x71] sm:$0xff]
        %v327 = vld [vmem:[%s1 + $0x100] sm:$0xff]
        %v328 = vld [vmem:[%s1 + $0x108] sm:$0xff]
        %v329 = vld [vmem:[%s1 + $0x110] sm:$0xff]
        %v330 = vld [vmem:[%s1 + $0x118] sm:$0xff]
        %v331 = vld [vmem:[%s1 + $0x120] sm:$0xff]
        %v332 = vld [vmem:[%s1 + $0x128] sm:$0xff]
        %v333 = vld [vmem:[%s1 + $0x130] sm:$0xff]
        %v334 = vld [vmem:[%s1 + $0x138] sm:$0xff]
        %v335 = vld [vmem:[%s1 + $0x140] sm:$0xff]
        %v336 = vld [vmem:[%s1 + $0x148] sm:$0xff]
        %v337 = vld [vmem:[%s1 + $0x150] sm:$0xff]
        %v338 = vld [vmem:[%s1 + $0x158] sm:$0xff]
        %v339 = vld [vmem:[%s1 + $0x160] sm:$0xff]
        %v340 = vld [vmem:[%s1 + $0x168] sm:$0xff]
        %v341 = vld [vmem:[%s1 + $0x170] sm:$0xff]
        %v342 = vld [vmem:[%s1 + $0x178] sm:$0xff]
        %343 = vmatpush.msra.mxu0 %v342
        %344 = vmatpush.msra.mxu0 %v341
        %345 = vmatpush.msra.mxu0 %v340
        %346 = vmatpush.msra.mxu0 %v339
        %347 = vmatpush.msra.mxu0 %v338
        %348 = vmatpush.msra.mxu0 %v337
        %349 = vmatpush.msra.mxu0 %v336
        %350 = vmatpush.msra.mxu0 %v335
        %351 = vmatpush.msra.mxu0 %v334
        %352 = vmatpush.msra.mxu0 %v333
        %353 = vmatpush.msra.mxu0 %v332
        %354 = vmatpush.msra.mxu0 %v331
        %355 = vmatpush.msra.mxu0 %v330
        %356 = vmatpush.msra.mxu0 %v329
        %357 = vmatpush.msra.mxu0 %v328
        %358 = vmatpush.msra.mxu0 %v327
        %359 = vmatmul.f32.gmra.mxu0 %v319
        %v360 = vpop.f32.mrf.mxu0
        %v361 = vadd.f32 0.0, %v360
        %362 = vmatmul.f32.gmra.mxu0 %v320
        %v363 = vpop.f32.mrf.mxu0
        %v364 = vadd.f32 0.0, %v363
        %365 = vmatmul.f32.gmra.mxu0 %v321
        %v366 = vpop.f32.mrf.mxu0
        %v367 = vadd.f32 0.0, %v366
        %368 = vmatmul.f32.gmra.mxu0 %v322
        %v369 = vpop.f32.mrf.mxu0
        %v370 = vadd.f32 0.0, %v369
        %371 = vmatmul.f32.gmra.mxu0 %v323
        %v372 = vpop.f32.mrf.mxu0
        %v373 = vadd.f32 0.0, %v372
        %374 = vmatmul.f32.gmra.mxu0 %v324
        %v375 = vpop.f32.mrf.mxu0
        %v376 = vadd.f32 0.0, %v375
        %377 = vmatmul.f32.gmra.mxu0 %v325
        %v378 = vpop.f32.mrf.mxu0
        %v379 = vadd.f32 0.0, %v378
        %380 = vmatmul.f32.gmra.mxu0 %v326
        %v381 = vpop.f32.mrf.mxu0
        %v382 = vadd.f32 0.0, %v381
        %383 = vdwg.mxu0
        %v384 = vadd.f32 %v296, %v361
        %v385 = vadd.f32 %v299, %v364
        %v386 = vadd.f32 %v302, %v367
        %v387 = vadd.f32 %v305, %v370
        %v388 = vadd.f32 %v308, %v373
        %v389 = vadd.f32 %v311, %v376
        %v390 = vadd.f32 %v314, %v379
        %v391 = vadd.f32 %v317, %v382
        %s392 = sadd.s32 %s185, 288
        %s393 = scalar_lea.vmem %s182, %s392
        %v394 = vld [vmem:[%s393] sm:$0xff]
        %v395 = vld [vmem:[%s393 + $0x10] sm:$0xff]
        %v396 = vld [vmem:[%s393 + $0x20] sm:$0xff]
        %v397 = vld [vmem:[%s393 + $0x30] sm:$0xff]
        %v398 = vld [vmem:[%s393 + $0x40] sm:$0xff]
        %v399 = vld [vmem:[%s393 + $0x50] sm:$0xff]
        %v400 = vld [vmem:[%s393 + $0x60] sm:$0xff]
        %v401 = vld [vmem:[%s393 + $0x70] sm:$0xff]
        %v402 = vld [vmem:[%s1 + $0x180] sm:$0xff]
        %v403 = vld [vmem:[%s1 + $0x188] sm:$0xff]
        %v404 = vld [vmem:[%s1 + $0x190] sm:$0xff]
        %v405 = vld [vmem:[%s1 + $0x198] sm:$0xff]
        %v406 = vld [vmem:[%s1 + $0x1a0] sm:$0xff]
        %v407 = vld [vmem:[%s1 + $0x1a8] sm:$0xff]
        %v408 = vld [vmem:[%s1 + $0x1b0] sm:$0xff]
        %v409 = vld [vmem:[%s1 + $0x1b8] sm:$0xff]
        %v410 = vld [vmem:[%s1 + $0x1c0] sm:$0xff]
        %v411 = vld [vmem:[%s1 + $0x1c8] sm:$0xff]
        %v412 = vld [vmem:[%s1 + $0x1d0] sm:$0xff]
        %v413 = vld [vmem:[%s1 + $0x1d8] sm:$0xff]
        %v414 = vld [vmem:[%s1 + $0x1e0] sm:$0xff]
        %v415 = vld [vmem:[%s1 + $0x1e8] sm:$0xff]
        %v416 = vld [vmem:[%s1 + $0x1f0] sm:$0xff]
        %v417 = vld [vmem:[%s1 + $0x1f8] sm:$0xff]
        %418 = vmatpush.msra.mxu0 %v417
        %419 = vmatpush.msra.mxu0 %v416
        %420 = vmatpush.msra.mxu0 %v415
        %421 = vmatpush.msra.mxu0 %v414
        %422 = vmatpush.msra.mxu0 %v413
        %423 = vmatpush.msra.mxu0 %v412
        %424 = vmatpush.msra.mxu0 %v411
        %425 = vmatpush.msra.mxu0 %v410
        %426 = vmatpush.msra.mxu0 %v409
        %427 = vmatpush.msra.mxu0 %v408
        %428 = vmatpush.msra.mxu0 %v407
        %429 = vmatpush.msra.mxu0 %v406
        %430 = vmatpush.msra.mxu0 %v405
        %431 = vmatpush.msra.mxu0 %v404
        %432 = vmatpush.msra.mxu0 %v403
        %433 = vmatpush.msra.mxu0 %v402
        %434 = vmatmul.f32.gmra.mxu0 %v394
        %v435 = vpop.f32.mrf.mxu0
        %v436 = vadd.f32 0.0, %v435
        %437 = vmatmul.f32.gmra.mxu0 %v395
        %v438 = vpop.f32.mrf.mxu0
        %v439 = vadd.f32 0.0, %v438
        %440 = vmatmul.f32.gmra.mxu0 %v396
        %v441 = vpop.f32.mrf.mxu0
        %v442 = vadd.f32 0.0, %v441
        %443 = vmatmul.f32.gmra.mxu0 %v397
        %v444 = vpop.f32.mrf.mxu0
        %v445 = vadd.f32 0.0, %v444
        %446 = vmatmul.f32.gmra.mxu0 %v398
        %v447 = vpop.f32.mrf.mxu0
        %v448 = vadd.f32 0.0, %v447
        %449 = vmatmul.f32.gmra.mxu0 %v399
        %v450 = vpop.f32.mrf.mxu0
        %v451 = vadd.f32 0.0, %v450
        %452 = vmatmul.f32.gmra.mxu0 %v400
        %v453 = vpop.f32.mrf.mxu0
        %v454 = vadd.f32 0.0, %v453
        %455 = vmatmul.f32.gmra.mxu0 %v401
        %v456 = vpop.f32.mrf.mxu0
        %v457 = vadd.f32 0.0, %v456
        %458 = vdwg.mxu0
        %v459 = vadd.f32 %v384, %v436
        %v460 = vadd.f32 %v385, %v439
        %v461 = vadd.f32 %v386, %v442
        %v462 = vadd.f32 %v387, %v445
        %v463 = vadd.f32 %v388, %v448
        %v464 = vadd.f32 %v389, %v451
        %v465 = vadd.f32 %v390, %v454
        %v466 = vadd.f32 %v391, %v457
        %s467 = sadd.s32 %s185, 432
        %s468 = scalar_lea.vmem %s182, %s467
        %v469 = vld [vmem:[%s468] sm:$0xff]
        %v470 = vld [vmem:[%s468 + $0x10] sm:$0xff]
        %v471 = vld [vmem:[%s468 + $0x20] sm:$0xff]
        %v472 = vld [vmem:[%s468 + $0x30] sm:$0xff]
        %v473 = vld [vmem:[%s468 + $0x40] sm:$0xff]
        %v474 = vld [vmem:[%s468 + $0x50] sm:$0xff]
        %v475 = vld [vmem:[%s468 + $0x60] sm:$0xff]
        %v476 = vld [vmem:[%s468 + $0x70] sm:$0xff]
        %v477 = vld [vmem:[%s1 + $0x200] sm:$0xff]
        %v478 = vld [vmem:[%s1 + $0x208] sm:$0xff]
        %v479 = vld [vmem:[%s1 + $0x210] sm:$0xff]
        %v480 = vld [vmem:[%s1 + $0x218] sm:$0xff]
        %v481 = vld [vmem:[%s1 + $0x220] sm:$0xff]
        %v482 = vld [vmem:[%s1 + $0x228] sm:$0xff]
        %v483 = vld [vmem:[%s1 + $0x230] sm:$0xff]
        %v484 = vld [vmem:[%s1 + $0x238] sm:$0xff]
        %v485 = vld [vmem:[%s1 + $0x240] sm:$0xff]
        %v486 = vld [vmem:[%s1 + $0x248] sm:$0xff]
        %v487 = vld [vmem:[%s1 + $0x250] sm:$0xff]
        %v488 = vld [vmem:[%s1 + $0x258] sm:$0xff]
        %v489 = vld [vmem:[%s1 + $0x260] sm:$0xff]
        %v490 = vld [vmem:[%s1 + $0x268] sm:$0xff]
        %v491 = vld [vmem:[%s1 + $0x270] sm:$0xff]
        %v492 = vld [vmem:[%s1 + $0x278] sm:$0xff]
        %493 = vmatpush.msra.mxu0 %v492
        %494 = vmatpush.msra.mxu0 %v491
        %495 = vmatpush.msra.mxu0 %v490
        %496 = vmatpush.msra.mxu0 %v489
        %497 = vmatpush.msra.mxu0 %v488
        %498 = vmatpush.msra.mxu0 %v487
        %499 = vmatpush.msra.mxu0 %v486
        %500 = vmatpush.msra.mxu0 %v485
        %501 = vmatpush.msra.mxu0 %v484
        %502 = vmatpush.msra.mxu0 %v483
        %503 = vmatpush.msra.mxu0 %v482
        %504 = vmatpush.msra.mxu0 %v481
        %505 = vmatpush.msra.mxu0 %v480
        %506 = vmatpush.msra.mxu0 %v479
        %507 = vmatpush.msra.mxu0 %v478
        %508 = vmatpush.msra.mxu0 %v477
        %509 = vmatmul.f32.gmra.mxu0 %v469
        %v510 = vpop.f32.mrf.mxu0
        %v511 = vadd.f32 0.0, %v510
        %512 = vmatmul.f32.gmra.mxu0 %v470
        %v513 = vpop.f32.mrf.mxu0
        %v514 = vadd.f32 0.0, %v513
        %515 = vmatmul.f32.gmra.mxu0 %v471
        %v516 = vpop.f32.mrf.mxu0
        %v517 = vadd.f32 0.0, %v516
        %518 = vmatmul.f32.gmra.mxu0 %v472
        %v519 = vpop.f32.mrf.mxu0
        %v520 = vadd.f32 0.0, %v519
        %521 = vmatmul.f32.gmra.mxu0 %v473
        %v522 = vpop.f32.mrf.mxu0
        %v523 = vadd.f32 0.0, %v522
        %524 = vmatmul.f32.gmra.mxu0 %v474
        %v525 = vpop.f32.mrf.mxu0
        %v526 = vadd.f32 0.0, %v525
        %527 = vmatmul.f32.gmra.mxu0 %v475
        %v528 = vpop.f32.mrf.mxu0
        %v529 = vadd.f32 0.0, %v528
        %530 = vmatmul.f32.gmra.mxu0 %v476
        %v531 = vpop.f32.mrf.mxu0
        %v532 = vadd.f32 0.0, %v531
        %533 = vdwg.mxu0
        %v534 = vadd.f32 %v459, %v511
        %v535 = vadd.f32 %v460, %v514
        %v536 = vadd.f32 %v461, %v517
        %v537 = vadd.f32 %v462, %v520
        %v538 = vadd.f32 %v463, %v523
        %v539 = vadd.f32 %v464, %v526
        %v540 = vadd.f32 %v465, %v529
        %v541 = vadd.f32 %v466, %v532
        %v542 = vld [vmem:[%s393 + $0x1] sm:$0xff]
        %v543 = vld [vmem:[%s393 + $0x11] sm:$0xff]
        %v544 = vld [vmem:[%s393 + $0x21] sm:$0xff]
        %v545 = vld [vmem:[%s393 + $0x31] sm:$0xff]
        %v546 = vld [vmem:[%s393 + $0x41] sm:$0xff]
        %v547 = vld [vmem:[%s393 + $0x51] sm:$0xff]
        %v548 = vld [vmem:[%s393 + $0x61] sm:$0xff]
        %v549 = vld [vmem:[%s393 + $0x71] sm:$0xff]
        %v550 = vld [vmem:[%s1 + $0x280] sm:$0xff]
        %v551 = vld [vmem:[%s1 + $0x288] sm:$0xff]
        %v552 = vld [vmem:[%s1 + $0x290] sm:$0xff]
        %v553 = vld [vmem:[%s1 + $0x298] sm:$0xff]
        %v554 = vld [vmem:[%s1 + $0x2a0] sm:$0xff]
        %v555 = vld [vmem:[%s1 + $0x2a8] sm:$0xff]
        %v556 = vld [vmem:[%s1 + $0x2b0] sm:$0xff]
        %v557 = vld [vmem:[%s1 + $0x2b8] sm:$0xff]
        %v558 = vld [vmem:[%s1 + $0x2c0] sm:$0xff]
        %v559 = vld [vmem:[%s1 + $0x2c8] sm:$0xff]
        %v560 = vld [vmem:[%s1 + $0x2d0] sm:$0xff]
        %v561 = vld [vmem:[%s1 + $0x2d8] sm:$0xff]
        %v562 = vld [vmem:[%s1 + $0x2e0] sm:$0xff]
        %v563 = vld [vmem:[%s1 + $0x2e8] sm:$0xff]
        %v564 = vld [vmem:[%s1 + $0x2f0] sm:$0xff]
        %v565 = vld [vmem:[%s1 + $0x2f8] sm:$0xff]
        %566 = vmatpush.msra.mxu0 %v565
        %567 = vmatpush.msra.mxu0 %v564
        %568 = vmatpush.msra.mxu0 %v563
        %569 = vmatpush.msra.mxu0 %v562
        %570 = vmatpush.msra.mxu0 %v561
        %571 = vmatpush.msra.mxu0 %v560
        %572 = vmatpush.msra.mxu0 %v559
        %573 = vmatpush.msra.mxu0 %v558
        %574 = vmatpush.msra.mxu0 %v557
        %575 = vmatpush.msra.mxu0 %v556
        %576 = vmatpush.msra.mxu0 %v555
        %577 = vmatpush.msra.mxu0 %v554
        %578 = vmatpush.msra.mxu0 %v553
        %579 = vmatpush.msra.mxu0 %v552
        %580 = vmatpush.msra.mxu0 %v551
        %581 = vmatpush.msra.mxu0 %v550
        %582 = vmatmul.f32.gmra.mxu0 %v542
        %v583 = vpop.f32.mrf.mxu0
        %v584 = vadd.f32 0.0, %v583
        %585 = vmatmul.f32.gmra.mxu0 %v543
        %v586 = vpop.f32.mrf.mxu0
        %v587 = vadd.f32 0.0, %v586
        %588 = vmatmul.f32.gmra.mxu0 %v544
        %v589 = vpop.f32.mrf.mxu0
        %v590 = vadd.f32 0.0, %v589
        %591 = vmatmul.f32.gmra.mxu0 %v545
        %v592 = vpop.f32.mrf.mxu0
        %v593 = vadd.f32 0.0, %v592
        %594 = vmatmul.f32.gmra.mxu0 %v546
        %v595 = vpop.f32.mrf.mxu0
        %v596 = vadd.f32 0.0, %v595
        %597 = vmatmul.f32.gmra.mxu0 %v547
        %v598 = vpop.f32.mrf.mxu0
        %v599 = vadd.f32 0.0, %v598
        %600 = vmatmul.f32.gmra.mxu0 %v548
        %v601 = vpop.f32.mrf.mxu0
        %v602 = vadd.f32 0.0, %v601
        %603 = vmatmul.f32.gmra.mxu0 %v549
        %v604 = vpop.f32.mrf.mxu0
        %v605 = vadd.f32 0.0, %v604
        %606 = vdwg.mxu0
        %v607 = vadd.f32 %v534, %v584
        %v608 = vadd.f32 %v535, %v587
        %v609 = vadd.f32 %v536, %v590
        %v610 = vadd.f32 %v537, %v593
        %v611 = vadd.f32 %v538, %v596
        %v612 = vadd.f32 %v539, %v599
        %v613 = vadd.f32 %v540, %v602
        %v614 = vadd.f32 %v541, %v605
        %s615 = sadd.s32 %s184, 1
        %s616 = smul.u32 %s615, 16
        %s617 = scalar_lea.vmem %s182, %s616
        %v618 = vld [vmem:[%s617] sm:$0xff]
        %v619 = vld [vmem:[%s617 + $0x10] sm:$0xff]
        %v620 = vld [vmem:[%s617 + $0x20] sm:$0xff]
        %v621 = vld [vmem:[%s617 + $0x30] sm:$0xff]
        %v622 = vld [vmem:[%s617 + $0x40] sm:$0xff]
        %v623 = vld [vmem:[%s617 + $0x50] sm:$0xff]
        %v624 = vld [vmem:[%s617 + $0x60] sm:$0xff]
        %v625 = vld [vmem:[%s617 + $0x70] sm:$0xff]
        %v626 = vld [vmem:[%s1 + $0x300] sm:$0xff]
        %v627 = vld [vmem:[%s1 + $0x308] sm:$0xff]
        %v628 = vld [vmem:[%s1 + $0x310] sm:$0xff]
        %v629 = vld [vmem:[%s1 + $0x318] sm:$0xff]
        %v630 = vld [vmem:[%s1 + $0x320] sm:$0xff]
        %v631 = vld [vmem:[%s1 + $0x328] sm:$0xff]
        %v632 = vld [vmem:[%s1 + $0x330] sm:$0xff]
        %v633 = vld [vmem:[%s1 + $0x338] sm:$0xff]
        %v634 = vld [vmem:[%s1 + $0x340] sm:$0xff]
        %v635 = vld [vmem:[%s1 + $0x348] sm:$0xff]
        %v636 = vld [vmem:[%s1 + $0x350] sm:$0xff]
        %v637 = vld [vmem:[%s1 + $0x358] sm:$0xff]
        %v638 = vld [vmem:[%s1 + $0x360] sm:$0xff]
        %v639 = vld [vmem:[%s1 + $0x368] sm:$0xff]
        %v640 = vld [vmem:[%s1 + $0x370] sm:$0xff]
        %v641 = vld [vmem:[%s1 + $0x378] sm:$0xff]
        %642 = vmatpush.msra.mxu0 %v641
        %643 = vmatpush.msra.mxu0 %v640
        %644 = vmatpush.msra.mxu0 %v639
        %645 = vmatpush.msra.mxu0 %v638
        %646 = vmatpush.msra.mxu0 %v637
        %647 = vmatpush.msra.mxu0 %v636
        %648 = vmatpush.msra.mxu0 %v635
        %649 = vmatpush.msra.mxu0 %v634
        %650 = vmatpush.msra.mxu0 %v633
        %651 = vmatpush.msra.mxu0 %v632
        %652 = vmatpush.msra.mxu0 %v631
        %653 = vmatpush.msra.mxu0 %v630
        %654 = vmatpush.msra.mxu0 %v629
        %655 = vmatpush.msra.mxu0 %v628
        %656 = vmatpush.msra.mxu0 %v627
        %657 = vmatpush.msra.mxu0 %v626
        %658 = vmatmul.f32.gmra.mxu0 %v618
        %v659 = vpop.f32.mrf.mxu0
        %v660 = vadd.f32 0.0, %v659
        %661 = vmatmul.f32.gmra.mxu0 %v619
        %v662 = vpop.f32.mrf.mxu0
        %v663 = vadd.f32 0.0, %v662
        %664 = vmatmul.f32.gmra.mxu0 %v620
        %v665 = vpop.f32.mrf.mxu0
        %v666 = vadd.f32 0.0, %v665
        %667 = vmatmul.f32.gmra.mxu0 %v621
        %v668 = vpop.f32.mrf.mxu0
        %v669 = vadd.f32 0.0, %v668
        %670 = vmatmul.f32.gmra.mxu0 %v622
        %v671 = vpop.f32.mrf.mxu0
        %v672 = vadd.f32 0.0, %v671
        %673 = vmatmul.f32.gmra.mxu0 %v623
        %v674 = vpop.f32.mrf.mxu0
        %v675 = vadd.f32 0.0, %v674
        %676 = vmatmul.f32.gmra.mxu0 %v624
        %v677 = vpop.f32.mrf.mxu0
        %v678 = vadd.f32 0.0, %v677
        %679 = vmatmul.f32.gmra.mxu0 %v625
        %v680 = vpop.f32.mrf.mxu0
        %v681 = vadd.f32 0.0, %v680
        %682 = vdwg.mxu0
        %v683 = vadd.f32 %v607, %v660
        %v684 = vadd.f32 %v608, %v663
        %v685 = vadd.f32 %v609, %v666
        %v686 = vadd.f32 %v610, %v669
        %v687 = vadd.f32 %v611, %v672
        %v688 = vadd.f32 %v612, %v675
        %v689 = vadd.f32 %v613, %v678
        %v690 = vadd.f32 %v614, %v681
        %s691 = sadd.s32 %s616, 144
        %s692 = scalar_lea.vmem %s182, %s691
        %v693 = vld [vmem:[%s692] sm:$0xff]
        %v694 = vld [vmem:[%s692 + $0x10] sm:$0xff]
        %v695 = vld [vmem:[%s692 + $0x20] sm:$0xff]
        %v696 = vld [vmem:[%s692 + $0x30] sm:$0xff]
        %v697 = vld [vmem:[%s692 + $0x40] sm:$0xff]
        %v698 = vld [vmem:[%s692 + $0x50] sm:$0xff]
        %v699 = vld [vmem:[%s692 + $0x60] sm:$0xff]
        %v700 = vld [vmem:[%s692 + $0x70] sm:$0xff]
        %v701 = vld [vmem:[%s1 + $0x380] sm:$0xff]
        %v702 = vld [vmem:[%s1 + $0x388] sm:$0xff]
        %v703 = vld [vmem:[%s1 + $0x390] sm:$0xff]
        %v704 = vld [vmem:[%s1 + $0x398] sm:$0xff]
        %v705 = vld [vmem:[%s1 + $0x3a0] sm:$0xff]
        %v706 = vld [vmem:[%s1 + $0x3a8] sm:$0xff]
        %v707 = vld [vmem:[%s1 + $0x3b0] sm:$0xff]
        %v708 = vld [vmem:[%s1 + $0x3b8] sm:$0xff]
        %v709 = vld [vmem:[%s1 + $0x3c0] sm:$0xff]
        %v710 = vld [vmem:[%s1 + $0x3c8] sm:$0xff]
        %v711 = vld [vmem:[%s1 + $0x3d0] sm:$0xff]
        %v712 = vld [vmem:[%s1 + $0x3d8] sm:$0xff]
        %v713 = vld [vmem:[%s1 + $0x3e0] sm:$0xff]
        %v714 = vld [vmem:[%s1 + $0x3e8] sm:$0xff]
        %v715 = vld [vmem:[%s1 + $0x3f0] sm:$0xff]
        %v716 = vld [vmem:[%s1 + $0x3f8] sm:$0xff]
        %717 = vmatpush.msra.mxu0 %v716
        %718 = vmatpush.msra.mxu0 %v715
        %719 = vmatpush.msra.mxu0 %v714
        %720 = vmatpush.msra.mxu0 %v713
        %721 = vmatpush.msra.mxu0 %v712
        %722 = vmatpush.msra.mxu0 %v711
        %723 = vmatpush.msra.mxu0 %v710
        %724 = vmatpush.msra.mxu0 %v709
        %725 = vmatpush.msra.mxu0 %v708
        %726 = vmatpush.msra.mxu0 %v707
        %727 = vmatpush.msra.mxu0 %v706
        %728 = vmatpush.msra.mxu0 %v705
        %729 = vmatpush.msra.mxu0 %v704
        %730 = vmatpush.msra.mxu0 %v703
        %731 = vmatpush.msra.mxu0 %v702
        %732 = vmatpush.msra.mxu0 %v701
        %733 = vmatmul.f32.gmra.mxu0 %v693
        %v734 = vpop.f32.mrf.mxu0
        %v735 = vadd.f32 0.0, %v734
        %736 = vmatmul.f32.gmra.mxu0 %v694
        %v737 = vpop.f32.mrf.mxu0
        %v738 = vadd.f32 0.0, %v737
        %739 = vmatmul.f32.gmra.mxu0 %v695
        %v740 = vpop.f32.mrf.mxu0
        %v741 = vadd.f32 0.0, %v740
        %742 = vmatmul.f32.gmra.mxu0 %v696
        %v743 = vpop.f32.mrf.mxu0
        %v744 = vadd.f32 0.0, %v743
        %745 = vmatmul.f32.gmra.mxu0 %v697
        %v746 = vpop.f32.mrf.mxu0
        %v747 = vadd.f32 0.0, %v746
        %748 = vmatmul.f32.gmra.mxu0 %v698
        %v749 = vpop.f32.mrf.mxu0
        %v750 = vadd.f32 0.0, %v749
        %751 = vmatmul.f32.gmra.mxu0 %v699
        %v752 = vpop.f32.mrf.mxu0
        %v753 = vadd.f32 0.0, %v752
        %754 = vmatmul.f32.gmra.mxu0 %v700
        %v755 = vpop.f32.mrf.mxu0
        %v756 = vadd.f32 0.0, %v755
        %757 = vdwg.mxu0
        %v758 = vadd.f32 %v683, %v735
        %v759 = vadd.f32 %v684, %v738
        %v760 = vadd.f32 %v685, %v741
        %v761 = vadd.f32 %v686, %v744
        %v762 = vadd.f32 %v687, %v747
        %v763 = vadd.f32 %v688, %v750
        %v764 = vadd.f32 %v689, %v753
        %v765 = vadd.f32 %v690, %v756
        %v766 = vld [vmem:[%s617 + $0x1] sm:$0xff]
        %v767 = vld [vmem:[%s617 + $0x11] sm:$0xff]
        %v768 = vld [vmem:[%s617 + $0x21] sm:$0xff]
        %v769 = vld [vmem:[%s617 + $0x31] sm:$0xff]
        %v770 = vld [vmem:[%s617 + $0x41] sm:$0xff]
        %v771 = vld [vmem:[%s617 + $0x51] sm:$0xff]
        %v772 = vld [vmem:[%s617 + $0x61] sm:$0xff]
        %v773 = vld [vmem:[%s617 + $0x71] sm:$0xff]
        %v774 = vld [vmem:[%s1 + $0x400] sm:$0xff]
        %v775 = vld [vmem:[%s1 + $0x408] sm:$0xff]
        %v776 = vld [vmem:[%s1 + $0x410] sm:$0xff]
        %v777 = vld [vmem:[%s1 + $0x418] sm:$0xff]
        %v778 = vld [vmem:[%s1 + $0x420] sm:$0xff]
        %v779 = vld [vmem:[%s1 + $0x428] sm:$0xff]
        %v780 = vld [vmem:[%s1 + $0x430] sm:$0xff]
        %v781 = vld [vmem:[%s1 + $0x438] sm:$0xff]
        %v782 = vld [vmem:[%s1 + $0x440] sm:$0xff]
        %v783 = vld [vmem:[%s1 + $0x448] sm:$0xff]
        %v784 = vld [vmem:[%s1 + $0x450] sm:$0xff]
        %v785 = vld [vmem:[%s1 + $0x458] sm:$0xff]
        %v786 = vld [vmem:[%s1 + $0x460] sm:$0xff]
        %v787 = vld [vmem:[%s1 + $0x468] sm:$0xff]
        %v788 = vld [vmem:[%s1 + $0x470] sm:$0xff]
        %v789 = vld [vmem:[%s1 + $0x478] sm:$0xff]
        %790 = vmatpush.msra.mxu0 %v789
        %791 = vmatpush.msra.mxu0 %v788
        %792 = vmatpush.msra.mxu0 %v787
        %793 = vmatpush.msra.mxu0 %v786
        %794 = vmatpush.msra.mxu0 %v785
        %795 = vmatpush.msra.mxu0 %v784
        %796 = vmatpush.msra.mxu0 %v783
        %797 = vmatpush.msra.mxu0 %v782
        %798 = vmatpush.msra.mxu0 %v781
        %799 = vmatpush.msra.mxu0 %v780
        %800 = vmatpush.msra.mxu0 %v779
        %801 = vmatpush.msra.mxu0 %v778
        %802 = vmatpush.msra.mxu0 %v777
        %803 = vmatpush.msra.mxu0 %v776
        %804 = vmatpush.msra.mxu0 %v775
        %805 = vmatpush.msra.mxu0 %v774
        %806 = vmatmul.f32.gmra.mxu0 %v766
        %v807 = vpop.f32.mrf.mxu0
        %v808 = vadd.f32 0.0, %v807
        %809 = vmatmul.f32.gmra.mxu0 %v767
        %v810 = vpop.f32.mrf.mxu0
        %v811 = vadd.f32 0.0, %v810
        %812 = vmatmul.f32.gmra.mxu0 %v768
        %v813 = vpop.f32.mrf.mxu0
        %v814 = vadd.f32 0.0, %v813
        %815 = vmatmul.f32.gmra.mxu0 %v769
        %v816 = vpop.f32.mrf.mxu0
        %v817 = vadd.f32 0.0, %v816
        %818 = vmatmul.f32.gmra.mxu0 %v770
        %v819 = vpop.f32.mrf.mxu0
        %v820 = vadd.f32 0.0, %v819
        %821 = vmatmul.f32.gmra.mxu0 %v771
        %v822 = vpop.f32.mrf.mxu0
        %v823 = vadd.f32 0.0, %v822
        %824 = vmatmul.f32.gmra.mxu0 %v772
        %v825 = vpop.f32.mrf.mxu0
        %v826 = vadd.f32 0.0, %v825
        %827 = vmatmul.f32.gmra.mxu0 %v773
        %v828 = vpop.f32.mrf.mxu0
        %v829 = vadd.f32 0.0, %v828
        %830 = vdwg.mxu0
        %v831 = vadd.f32 %v758, %v808
        %v832 = vadd.f32 %v759, %v811
        %v833 = vadd.f32 %v760, %v814
        %v834 = vadd.f32 %v761, %v817
        %v835 = vadd.f32 %v762, %v820
        %v836 = vadd.f32 %v763, %v823
        %v837 = vadd.f32 %v764, %v826
        %v838 = vadd.f32 %v765, %v829
        %v839 = vld [vmem:[%s2] sm:$0x1]
        %v841 = vperm.slane %v839, 0
        %v843 = vadd.f32 %v831, %v841
        %v844 = vadd.f32 %v832, %v841
        %v845 = vadd.f32 %v833, %v841
        %v846 = vadd.f32 %v834, %v841
        %v847 = vadd.f32 %v835, %v841
        %v848 = vadd.f32 %v836, %v841
        %v849 = vadd.f32 %v837, %v841
        %v850 = vadd.f32 %v838, %v841
        %v851 = vmax.f32 %v843, 0.0
        %v852 = vmax.f32 %v844, 0.0
        %v853 = vmax.f32 %v845, 0.0
        %v854 = vmax.f32 %v846, 0.0
        %v855 = vmax.f32 %v847, 0.0
        %v856 = vmax.f32 %v848, 0.0
        %v857 = vmax.f32 %v849, 0.0
        %v858 = vmax.f32 %v850, 0.0
        %859 = vst [vmem:[%s177] sm:$0xff] %v851
        %860 = vst [vmem:[%s177 + $0x8] sm:$0xff] %v852
        %861 = vst [vmem:[%s177 + $0x10] sm:$0xff] %v853
        %862 = vst [vmem:[%s177 + $0x18] sm:$0xff] %v854
        %863 = vst [vmem:[%s177 + $0x20] sm:$0xff] %v855
        %864 = vst [vmem:[%s177 + $0x28] sm:$0xff] %v856
        %865 = vst [vmem:[%s177 + $0x30] sm:$0xff] %v857
        %866 = vst [vmem:[%s177 + $0x38] sm:$0xff] %v858
        %s867 = sand.u32 %s107, 1
        %s868 = scalar_lea.sflag [#allocation3], %s867
        %s869 = sand.u32 %s107, 1
        %s870 = smul.addr %s869, 64
        %s871 = scalar_lea.vmem [#allocation2], %s870
        // Predicated region
        $region33: #{tpu_custom_call.1} parent=31 // pred_check
          %p872 = pneg %p117
        $region34: #{tpu_custom_call.1} parent=31 // pred_check_branch
          %874 = sbr.rel (%p872) target = $region36
        $region35: #{tpu_custom_call.1} parent=31 // pred_region
          %s875 = smul.u32 8, %s22
          %877 = vsyncadd %s868, 0
          %s878 = smul.addr %s21, 8
          %s879 = sadd.s32 %s875, %s878
          %s880 = smul.addr %s879, 8
          %s881 = scalar_lea.hbm %s3, %s880
          %s882 = sshll.u32 %s871, 4
          %s883 = int_to_ptr.vmem [resolvable:$true] %s882
          %s884 = sshll.u32 %s881, 4
          %s885 = int_to_ptr.hbm [resolvable:$true] %s884
          %890 = dma.vmem_to_hbm [thread:$0]  %s883, 1024, %s885, %s868, 128, 128, 8
        $region36: #{tpu_custom_call.1} parent=31 // pred_fallthru
          _
      $region32: #{tpu_custom_call.1} parent=5 // pred_fallthru
        _
      %p891 = scmp.le.s32.totalorder 2, %s12
      // Predicated region
      $region37: #{tpu_custom_call.1} parent=5 // pred_check
        %p892 = pneg %p891
      $region38: #{tpu_custom_call.1} parent=5 // pred_check_branch
        %894 = sbr.rel (%p892) target = $region40
      $region39: #{tpu_custom_call.1} parent=5 // pred_region
        %s895 = ssub.s32 %s12, 2
        // Predicated region
        $region41: #{tpu_custom_call.1} parent=39 // pred_check
          %p896 = pneg %p123
        $region42: #{tpu_custom_call.1} parent=39 // pred_check_branch
          %898 = sbr.rel (%p896) target = $region44
        $region43: #{tpu_custom_call.1} parent=39 // pred_region
          %s899 = sand.u32 %s108, 1
          %s900 = scalar_lea.sflag [#allocation3], %s899
          %s901 = sand.u32 %s108, 1
          %s902 = smul.addr %s901, 64
          %s903 = scalar_lea.vmem [#allocation2], %s902
          %905 = dma.done %s900, 1024
        $region44: #{tpu_custom_call.1} parent=39 // pred_fallthru
          _
      $region40: #{tpu_custom_call.1} parent=5 // pred_fallthru
        _
    $region6: #{tpu_custom_call.1} parent=1 // loop_footer
      %s16 = sadd.s32 1, %s12
    $region7: #{tpu_custom_call.1} parent=1 // loop_footer_branch
      %11 = sbr.rel target = $region3
    $region8: #{tpu_custom_call.1} parent=1 // loop_exit
      _
    %906 = vsyncpa [#allocation3], 1
    %s907 = scalar_lea.sflag [#allocation3], 1
    %908 = vsyncpa %s907, 1

</llo_original>
